<compile_context>
chip_gen: v5e
topology: v5e:2x2
jax: 0.10.0
libtpu: 0.0.40
codegen_flags: <defaults>
</compile_context>

<pallas_src>
import functools

import jax
import jax.numpy as jnp
from jax.experimental import pallas as pl
from jax.experimental.pallas import tpu as pltpu


_CPAD = 128  # num_classes padded to one lane width for the in-kernel one-hot gather


def _round_up(n, m):
    return -(-n // m) * m


def _cdisc_kernel(x_ref, lbl_ref, w1_ref, embp_ref, w2_ref, b2_ref, w3t_ref,
                  b3_ref, o_ref):
    dt = w1_ref.dtype
    tb = x_ref.shape[0]

    # input_layer: cat(x, emb) @ W1 + b1
    #   == x @ W1[:P]  +  one_hot(labels) @ (E @ W1[P:] + b1)
    # (Dropout(0.2) is identity in eval mode.)
    h = jnp.dot(x_ref[...], w1_ref[...], preferred_element_type=jnp.float32)
    cls = jax.lax.broadcasted_iota(jnp.int32, (tb, embp_ref.shape[0]), 1)
    onehot = (lbl_ref[...] == cls).astype(dt)                    # (TB, 128)
    h = h + jnp.dot(onehot, embp_ref[...], preferred_element_type=jnp.float32)
    h = jnp.where(h > 0, h, 0.2 * h)                             # LeakyReLU(0.2), f32

    # hidden_layer: Linear -> LeakyReLU(0.2)
    h = jnp.dot(h.astype(dt), w2_ref[...],
                preferred_element_type=jnp.float32) + b2_ref[...]
    h = jnp.where(h > 0, h, 0.2 * h)

    # output_layer, batch-in-lanes: (1, H) @ (H, TB) -> (1, TB), then sigmoid.
    # Only 4 B/row of useful logit is ever written to HBM.
    o = jnp.dot(w3t_ref[...], h.T.astype(dt),
                preferred_element_type=jnp.float32) + b3_ref[0, 0]
    o_ref[...] = jax.nn.sigmoid(o).astype(o_ref.dtype)


@functools.partial(jax.jit, static_argnames=("block_b", "compute_dtype"))
def cdiscriminator_forward(x, labels, params, *, block_b=1024,
                           compute_dtype=jnp.bfloat16):
    """x: (B, image_size**2) f32, labels: (B,) int32 -> (B, 1) f32 probabilities."""
    embed_table, w1, b1, w2, b2, w3, b3 = params
    B, P = x.shape
    C = embed_table.shape[0]
    H = w2.shape[0]
    assert C <= _CPAD, "num_classes > 128 not supported by the in-kernel one-hot gather"
    in_sz = jnp.dtype(compute_dtype).itemsize

    # ---- glue (inside this jit so casts/pads fuse with their producers) ----
    emb_proj = embed_table @ w1[P:, :] + b1                          # (C, H) f32
    embp = jnp.pad(emb_proj, ((0, _CPAD - C), (0, 0))).astype(compute_dtype)
    w1x = w1[:P, :].astype(compute_dtype)                            # (P, H)
    w2c = w2.astype(compute_dtype)                                   # (H, H)
    w3t = w3.T.astype(compute_dtype)                                 # (1, H)
    b2f = b2.astype(jnp.float32).reshape(1, H)
    b3f = b3.astype(jnp.float32).reshape(1, 1)                       # SMEM scalar

    # ---- batch tiling: lane-dense tiles (multiple of 128), as large as the
    #      VMEM budget allows, but >=4 grid steps for big batches so the
    #      "parallel" axis shards across both v7x TensorCores and pipelines ----
    B_al = _round_up(B, 128)
    TB = min(_round_up(block_b, 128), B_al)
    if B_al >= 1024:
        TB = min(TB, max(128, _round_up(pl.cdiv(B_al, 4), 128)))

    def vmem_bytes(tb):
        return (2 * tb * P * in_sz                 # x tiles, double-buffered
                + 2 * tb * 4 + 2 * tb * 4          # label tiles + output row tiles
                + (P + _CPAD + H) * H * in_sz      # resident W1[:P], emb_proj, W2
                + H * in_sz + H * 4 + 8)           # W3^T, b2, b3

    while TB > 128 and vmem_bytes(TB) > (24 << 20):
        TB = max(128, _round_up(TB // 2, 128))

    nb = pl.cdiv(B_al, TB)
    B_pad = nb * TB

    xc = x.astype(compute_dtype)
    if B_pad != B:
        xc = jnp.pad(xc, ((0, B_pad - B), (0, 0)))
        labels = jnp.pad(labels, ((0, B_pad - B),))        # padded rows -> class 0
    lbl = labels.astype(jnp.int32).reshape(B_pad, 1)

    # ---- scheduling hints (refreshed for the new data movement) ------------
    flops = 2 * B_pad * (P * H + _CPAD * H + H * H + H)
    bytes_accessed = (B_pad * (P * in_sz + 4 + 4)                     # x, labels, out
                      + (P + _CPAD + H + 1) * H * in_sz + H * 4 + 4)  # weights/biases
    vmem_limit = int(min(max(2 * vmem_bytes(TB), 4 << 20), 32 << 20))

    out = pl.pallas_call(
        _cdisc_kernel,
        out_shape=jax.ShapeDtypeStruct((1, B_pad), jnp.float32),
        grid=(nb,),
        in_specs=[
            # Dominant stream; bump to pipeline_mode=pl.Buffered(3) only if
            # xprof shows exposed DMA after the tile enlargement.
            pl.BlockSpec((TB, P), lambda i: (i, 0)),            # x tile
            pl.BlockSpec((TB, 1), lambda i: (i, 0)),            # labels tile (4 B/row)
            pl.BlockSpec((P, H), lambda i: (0, 0)),             # W1[:P]       (resident)
            pl.BlockSpec((_CPAD, H), lambda i: (0, 0)),         # E@W1[P:]+b1  (resident)
            pl.BlockSpec((H, H), lambda i: (0, 0)),             # W2           (resident)
            pl.BlockSpec((1, H), lambda i: (0, 0)),             # b2           (resident)
            pl.BlockSpec((1, H), lambda i: (0, 0)),             # W3^T         (resident)
            pl.BlockSpec(memory_space=pltpu.MemorySpace.SMEM),  # b3 scalar
        ],
        out_specs=pl.BlockSpec((1, TB), lambda i: (0, i)),
        compiler_params=pltpu.CompilerParams(
            dimension_semantics=("parallel",),
            vmem_limit_bytes=vmem_limit),
        cost_estimate=pl.CostEstimate(
            flops=int(flops),
            transcendentals=int(B_pad),
            bytes_accessed=int(bytes_accessed)),
    )(xc, lbl, w1x, embp, w2c, b2f, w3t, b3f)

    return out[0, :B].reshape(B, 1)


def init_params(key, image_size, hidden_size, num_classes):
    """Deterministic synthetic parameters matching the PyTorch module shapes.

    nn.Linear(in, out) stores weight (out, in); we keep the transposed (in, out)
    layout so the kernel computes x @ W (+ b) == x @ W_pt.T + b.
    """
    in_feat = image_size ** 2 + num_classes
    ks = jax.random.split(key, 7)
    scale = 0.05
    embed_table = scale * jax.random.normal(ks[0], (num_classes, num_classes), jnp.float32)
    w1 = scale * jax.random.normal(ks[1], (in_feat, hidden_size), jnp.float32)
    b1 = scale * jax.random.normal(ks[2], (1, hidden_size), jnp.float32)
    w2 = scale * jax.random.normal(ks[3], (hidden_size, hidden_size), jnp.float32)
    b2 = scale * jax.random.normal(ks[4], (1, hidden_size), jnp.float32)
    w3 = scale * jax.random.normal(ks[5], (hidden_size, 1), jnp.float32)
    b3 = scale * jax.random.normal(ks[6], (1, 1), jnp.float32)
    return (embed_table, w1, b1, w2, b2, w3, b3)


def _reference_forward(x, labels, params):
    """Pure-JAX reference matching the PyTorch module (eval mode)."""
    embed_table, w1, b1, w2, b2, w3, b3 = params
    emb = jnp.take(embed_table, labels, axis=0)
    h = jnp.concatenate([x, emb], axis=-1)
    h = h @ w1 + b1
    h = jnp.where(h > 0, h, 0.2 * h)
    h = h @ w2 + b2
    h = jnp.where(h > 0, h, 0.2 * h)
    o = h @ w3 + b3
    return jax.nn.sigmoid(o)


if __name__ == "__main__":
    image_size = 16      # -> 256 flattened pixels (2 lane-groups, MXU friendly)
    hidden_size = 128
    num_classes = 10
    batch = 500          # pads to 512 -> exercises batch/label padding

    key = jax.random.PRNGKey(0)
    k_param, k_x, k_lbl = jax.random.split(key, 3)

    params = init_params(k_param, image_size, hidden_size, num_classes)
    x = jax.random.normal(k_x, (batch, image_size ** 2), jnp.float32)
    labels = jax.random.randint(k_lbl, (batch,), 0, num_classes, jnp.int32)

    ref = _reference_forward(x, labels, params)

    # f32 path with a 4-step parallel grid (TB=128): tight check vs reference.
    out_f32 = jax.block_until_ready(
        cdiscriminator_forward(x, labels, params, block_b=128,
                               compute_dtype=jnp.float32))
    assert out_f32.shape == (batch, 1), out_f32.shape
    assert jnp.allclose(out_f32, ref, atol=1e-4, rtol=1e-4), "f32 mismatch vs reference"

    # Default path: bf16 inputs/weights, f32 accumulation, single 512-row tile.
    out_bf16 = jax.block_until_ready(cdiscriminator_forward(x, labels, params))
    assert out_bf16.shape == (batch, 1), out_bf16.shape
    assert jnp.allclose(out_bf16, ref, atol=3e-2, rtol=3e-2), "bf16 mismatch vs reference"

    print("KERNEL_OK")
</pallas_src>

<mosaic_0001>
module attributes {stable_mosaic.version = 11 : i64} {
  func.func @_cdisc_kernel(%arg0: i32, %arg1: memref<128x256xf32, #tpu.memory_space<vmem>>, %arg2: memref<128x1xi32, #tpu.memory_space<vmem>>, %arg3: memref<256x128xf32, #tpu.memory_space<vmem>>, %arg4: memref<128x128xf32, #tpu.memory_space<vmem>>, %arg5: memref<128x128xf32, #tpu.memory_space<vmem>>, %arg6: memref<1x128xf32, #tpu.memory_space<vmem>>, %arg7: memref<1x128xf32, #tpu.memory_space<vmem>>, %arg8: memref<1x1xf32, #tpu.memory_space<smem>>, %arg9: memref<1x128xf32, #tpu.memory_space<vmem>>) attributes {dimension_semantics = [#tpu.dimension_semantics<parallel>], iteration_bounds = array<i64: 4>, scalar_prefetch = 0 : i64, scratch_operands = 0 : i64, tpu.core_type = #tpu.core_type<tc>, window_params = [{transform_indices = @transform_0, window_bounds = array<i64: 128, 256>}, {transform_indices = @transform_1, window_bounds = array<i64: 128, 1>}, {pipeline_mode = #tpu.pipeline_mode<synchronous>, transform_indices = @transform_2, window_bounds = array<i64: 256, 128>}, {pipeline_mode = #tpu.pipeline_mode<synchronous>, transform_indices = @transform_3, window_bounds = array<i64: 128, 128>}, {pipeline_mode = #tpu.pipeline_mode<synchronous>, transform_indices = @transform_4, window_bounds = array<i64: 128, 128>}, {pipeline_mode = #tpu.pipeline_mode<synchronous>, transform_indices = @transform_5, window_bounds = array<i64: 1, 128>}, {pipeline_mode = #tpu.pipeline_mode<synchronous>, transform_indices = @transform_6, window_bounds = array<i64: 1, 128>}, {transform_indices = @transform_7, window_bounds = array<i64: 1, 1>}, {transform_indices = @transform_8, window_bounds = array<i64: 1, 128>}]} {
    %c0 = arith.constant 0 : index
    %c0_0 = arith.constant 0 : index
    %0 = vector.load %arg1[%c0, %c0_0] : memref<128x256xf32, #tpu.memory_space<vmem>>, vector<128x256xf32>
    %c0_1 = arith.constant 0 : index
    %c0_2 = arith.constant 0 : index
    %1 = vector.load %arg3[%c0_1, %c0_2] : memref<256x128xf32, #tpu.memory_space<vmem>>, vector<256x128xf32>
    %cst = arith.constant dense<0.000000e+00> : vector<128x128xf32>
    %2 = tpu.matmul %0, %1, %cst {dimension_numbers = #tpu.dot_dimension_numbers<[1], [0], [0], [1], [0, 0, 1, 1], [], []>} : vector<128x256xf32>, vector<256x128xf32>, vector<128x128xf32> -> vector<128x128xf32>
    %3 = tpu.iota {dimensions = array<i32: 1>} : vector<128x128xi32>
    %c0_3 = arith.constant 0 : index
    %c0_4 = arith.constant 0 : index
    %4 = vector.load %arg2[%c0_3, %c0_4] : memref<128x1xi32, #tpu.memory_space<vmem>>, vector<128x1xi32>
    %5 = vector.broadcast %4 : vector<128x1xi32> to vector<128x128xi32>
    %6 = arith.cmpi eq, %5, %3 : vector<128x128xi32>
    %7 = arith.extui %6 : vector<128x128xi1> to vector<128x128xi32>
    %8 = arith.sitofp %7 : vector<128x128xi32> to vector<128x128xf32>
    %c0_5 = arith.constant 0 : index
    %c0_6 = arith.constant 0 : index
    %9 = vector.load %arg4[%c0_5, %c0_6] : memref<128x128xf32, #tpu.memory_space<vmem>>, vector<128x128xf32>
    %cst_7 = arith.constant dense<0.000000e+00> : vector<128x128xf32>
    %10 = tpu.matmul %8, %9, %cst_7 {dimension_numbers = #tpu.dot_dimension_numbers<[1], [0], [0], [1], [0, 0, 1, 1], [], []>} : vector<128x128xf32>, vector<128x128xf32>, vector<128x128xf32> -> vector<128x128xf32>
    %11 = arith.addf %2, %10 : vector<128x128xf32>
    %cst_8 = arith.constant 0.000000e+00 : f32
    %12 = vector.broadcast %cst_8 : f32 to vector<128x128xf32>
    %13 = arith.cmpf ogt, %11, %12 : vector<128x128xf32>
    %cst_9 = arith.constant 2.000000e-01 : f32
    %14 = vector.broadcast %cst_9 : f32 to vector<128x128xf32>
    %15 = arith.mulf %14, %11 : vector<128x128xf32>
    %16 = arith.select %13, %11, %15 : vector<128x128xi1>, vector<128x128xf32>
    %c0_10 = arith.constant 0 : index
    %c0_11 = arith.constant 0 : index
    %17 = vector.load %arg5[%c0_10, %c0_11] : memref<128x128xf32, #tpu.memory_space<vmem>>, vector<128x128xf32>
    %cst_12 = arith.constant dense<0.000000e+00> : vector<128x128xf32>
    %18 = tpu.matmul %16, %17, %cst_12 {dimension_numbers = #tpu.dot_dimension_numbers<[1], [0], [0], [1], [0, 0, 1, 1], [], []>} : vector<128x128xf32>, vector<128x128xf32>, vector<128x128xf32> -> vector<128x128xf32>
    %c0_13 = arith.constant 0 : index
    %c0_14 = arith.constant 0 : index
    %19 = vector.load %arg6[%c0_13, %c0_14] : memref<1x128xf32, #tpu.memory_space<vmem>>, vector<1x128xf32>
    %20 = vector.broadcast %19 : vector<1x128xf32> to vector<128x128xf32>
    %21 = arith.addf %18, %20 : vector<128x128xf32>
    %cst_15 = arith.constant 0.000000e+00 : f32
    %22 = vector.broadcast %cst_15 : f32 to vector<128x128xf32>
    %23 = arith.cmpf ogt, %21, %22 : vector<128x128xf32>
    %cst_16 = arith.constant 2.000000e-01 : f32
    %24 = vector.broadcast %cst_16 : f32 to vector<128x128xf32>
    %25 = arith.mulf %24, %21 : vector<128x128xf32>
    %26 = arith.select %23, %21, %25 : vector<128x128xi1>, vector<128x128xf32>
    %c0_17 = arith.constant 0 : index
    %c0_18 = arith.constant 0 : index
    %27 = vector.load %arg7[%c0_17, %c0_18] : memref<1x128xf32, #tpu.memory_space<vmem>>, vector<1x128xf32>
    %28 = tpu.transpose %26, [1, 0] : vector<128x128xf32> -> vector<128x128xf32>
    %cst_19 = arith.constant dense<0.000000e+00> : vector<1x128xf32>
    %29 = tpu.matmul %27, %28, %cst_19 {dimension_numbers = #tpu.dot_dimension_numbers<[1], [0], [0], [1], [0, 0, 1, 1], [], []>} : vector<1x128xf32>, vector<128x128xf32>, vector<1x128xf32> -> vector<1x128xf32>
    %c0_20 = arith.constant 0 : index
    %c0_21 = arith.constant 0 : index
    %30 = memref.load %arg8[%c0_20, %c0_21] : memref<1x1xf32, #tpu.memory_space<smem>>
    %31 = vector.broadcast %30 : f32 to vector<1x128xf32>
    %32 = arith.addf %29, %31 : vector<1x128xf32>
    %33 = arith.negf %32 : vector<1x128xf32>
    %34 = math.exp %33 : vector<1x128xf32>
    %cst_22 = arith.constant 1.000000e+00 : f32
    %35 = vector.broadcast %cst_22 : f32 to vector<1x128xf32>
    %36 = arith.addf %35, %34 : vector<1x128xf32>
    %37 = arith.divf %35, %36 : vector<1x128xf32>
    %c0_23 = arith.constant 0 : index
    %c0_24 = arith.constant 0 : index
    %38 = vector.load %arg9[%c0_23, %c0_24] : memref<1x128xf32, #tpu.memory_space<vmem>>, vector<1x128xf32>
    tpu.vector_store %arg9[%c0_23, %c0_24], %37 {strides = array<i32>} : memref<1x128xf32, #tpu.memory_space<vmem>>, vector<1x128xf32>,
    return
  }
  func.func @transform_0(%arg0: i32) -> (i32, i32) {
    %c0_i32 = arith.constant 0 : i32
    %c0_i32_0 = arith.constant 0 : i32
    return %arg0, %c0_i32 : i32, i32
  }
  func.func @transform_1(%arg0: i32) -> (i32, i32) {
    %c0_i32 = arith.constant 0 : i32
    %c0_i32_0 = arith.constant 0 : i32
    return %arg0, %c0_i32 : i32, i32
  }
  func.func @transform_2(%arg0: i32) -> (i32, i32) {
    %c0_i32 = arith.constant 0 : i32
    %c0_i32_0 = arith.constant 0 : i32
    %c0_i32_1 = arith.constant 0 : i32
    return %c0_i32, %c0_i32_0 : i32, i32
  }
  func.func @transform_3(%arg0: i32) -> (i32, i32) {
    %c0_i32 = arith.constant 0 : i32
    %c0_i32_0 = arith.constant 0 : i32
    %c0_i32_1 = arith.constant 0 : i32
    return %c0_i32, %c0_i32_0 : i32, i32
  }
  func.func @transform_4(%arg0: i32) -> (i32, i32) {
    %c0_i32 = arith.constant 0 : i32
    %c0_i32_0 = arith.constant 0 : i32
    %c0_i32_1 = arith.constant 0 : i32
    return %c0_i32, %c0_i32_0 : i32, i32
  }
  func.func @transform_5(%arg0: i32) -> (i32, i32) {
    %c0_i32 = arith.constant 0 : i32
    %c0_i32_0 = arith.constant 0 : i32
    %c0_i32_1 = arith.constant 0 : i32
    return %c0_i32, %c0_i32_0 : i32, i32
  }
  func.func @transform_6(%arg0: i32) -> (i32, i32) {
    %c0_i32 = arith.constant 0 : i32
    %c0_i32_0 = arith.constant 0 : i32
    %c0_i32_1 = arith.constant 0 : i32
    return %c0_i32, %c0_i32_0 : i32, i32
  }
  func.func @transform_7(%arg0: i32) -> (i32, i32) {
    %c0_i32 = arith.constant 0 : i32
    %c0_i32_0 = arith.constant 0 : i32
    %c0_i32_1 = arith.constant 0 : i32
    return %c0_i32, %c0_i32_0 : i32, i32
  }
  func.func @transform_8(%arg0: i32) -> (i32, i32) {
    %c0_i32 = arith.constant 0 : i32
    %c0_i32_0 = arith.constant 0 : i32
    return %c0_i32, %arg0 : i32, i32
  }
}

</mosaic_0001>

<llo_original>
// kernel: cdiscriminator_forward.1
$region0: #{cdiscriminator_forward.1}
  #allocation0 [shape = 'u32[]', space=smem, size = 0x4, offset = 0x4, fixed_abs, tag = 'smem constant byte address 0x4 - core index']
  #allocation1 [shape = 'u32[72,128]{1,0:T(1,128)}', space=vmem, size = 0x9000, scoped, tag = 'internal scratch']
  #allocation2 [shape = 'f32[1,1]{1,0:T(1,128)S(6)}', space=smem, size = 0x200, scoped, tag = 'scoped memory for cdiscriminator_forward.1']
  %s0 = inlined_call_operand.vmem [shape: f32[512,256], index: 0, kind: input, shape index: {}]
  %s1 = inlined_call_operand.vmem [shape: s32[512,1], index: 1, kind: input, shape index: {}]
  %s2 = inlined_call_operand.vmem [shape: f32[256,128], index: 2, kind: input, shape index: {}]
  %s3 = inlined_call_operand.vmem [shape: f32[128,128], index: 3, kind: input, shape index: {}]
  %s4 = inlined_call_operand.vmem [shape: f32[128,128], index: 4, kind: input, shape index: {}]
  %s5 = inlined_call_operand.vmem [shape: f32[1,128], index: 5, kind: input, shape index: {}]
  %s6 = inlined_call_operand.vmem [shape: f32[1,128], index: 6, kind: input, shape index: {}]
  %s7 = inlined_call_operand.<no memory space> [shape: f32[1,1], index: 7, kind: input, shape index: {}]
  %s8 = inlined_call_operand.vmem [shape: f32[1,512], index: 8, kind: output, shape index: {}]
  %s9 = sld [smem:[#allocation0]]
  $region65: #{cdiscriminator_forward.1} parent=0
    _
  %s11 = ssub.s32 1, %s9
  %s12 = scalar_select 0, %s11, %s9
  %13 = sst [smem:[#allocation2]] %s7
  loop: start=0, step=1, limit=6
  $region2: #{cdiscriminator_forward.1} parent=0 // loop_pre_header
    _
  $region3: #{cdiscriminator_forward.1} parent=0 // loop_header
    %s15 = sphi 0, %s19
    %p16 = scmp.ge.s32.totalorder %s15, 6
    %s25 = sphi 0, %s27
    %s28 = sphi 0, %s25
    %s29 = sphi 0, %s28
    %s45 = sphi 0, %s29
    %s51 = sphi 0, %s53
    %s54 = sphi 0, %s51
    %s55 = sphi 0, %s54
    %s71 = sphi 0, %s55
    %s75 = sphi 0, %s75
    %s77 = sphi 0, %s75
    %s78 = sphi 0, %s77
    %s92 = sphi 0, %s78
    %s96 = sphi 0, %s96
    %s98 = sphi 0, %s96
    %s99 = sphi 0, %s98
    %s113 = sphi 0, %s99
    %s117 = sphi 0, %s117
    %s119 = sphi 0, %s117
    %s120 = sphi 0, %s119
    %s134 = sphi 0, %s120
    %s138 = sphi 0, %s138
    %s140 = sphi 0, %s138
    %s141 = sphi 0, %s140
    %s155 = sphi 0, %s141
    %s159 = sphi 0, %s159
    %s161 = sphi 0, %s159
    %s162 = sphi 0, %s161
    %s176 = sphi 0, %s162
    %s180 = sphi 0, %s180
    %s182 = sphi 0, %s180
    %s183 = sphi 0, %s182
    %s197 = sphi 0, %s183
    %s203 = sphi 0, %s205
    %s206 = sphi 0, %s203
    %s207 = sphi 0, %s206
    %s223 = sphi 0, %s207
  $region4: #{cdiscriminator_forward.1} parent=0 // loop_header_branch
    %18 = sbr.rel (%p16) target = $region8
  $region5: #{cdiscriminator_forward.1} parent=0 // loop_body
    %s20 = ssub.s32 %s15, 1
    %s21 = ssub.s32 %s15, 2
    %s22 = sadd.s32 %s15, 1
    %s23 = ssub.s32 %s15, %s22
    %p24 = scmp.eq.s32.totalorder %s23, 0
    %s26 = sadd.s32 %s25, 1
    %s27 = scalar_select %p24, %s25, %s26
    %p30 = pneg %p24
    %p31 = scmp.eq.s32.totalorder %s15, 3
    %p32 = por %p30, %p31
    %p33 = scmp.ne.s32.totalorder %s25, %s28
    %p34 = scmp.eq.s32.totalorder %s15, 0
    %p35 = por %p33, %p34
    %p36 = scmp.ne.s32.totalorder %s25, %s28
    %p37 = scmp.eq.s32.totalorder %s20, 3
    %p38 = por %p36, %p37
    %p39 = scmp.ne.s32.totalorder %s28, %s29
    %p40 = scmp.eq.s32.totalorder %s20, 0
    %p41 = por %p39, %p40
    %p42 = scmp.ne.s32.totalorder %s28, %s29
    %p43 = scmp.eq.s32.totalorder %s21, 3
    %p44 = por %p42, %p43
    %p46 = scmp.ne.s32.totalorder %s29, %s45
    %p47 = scmp.eq.s32.totalorder %s21, 0
    %p48 = por %p46, %p47
    %s49 = ssub.s32 %s15, %s22
    %p50 = scmp.eq.s32.totalorder %s49, 0
    %s52 = sadd.s32 %s51, 1
    %s53 = scalar_select %p50, %s51, %s52
    %p56 = pneg %p50
    %p57 = scmp.eq.s32.totalorder %s15, 3
    %p58 = por %p56, %p57
    %p59 = scmp.ne.s32.totalorder %s51, %s54
    %p60 = scmp.eq.s32.totalorder %s15, 0
    %p61 = por %p59, %p60
    %p62 = scmp.ne.s32.totalorder %s51, %s54
    %p63 = scmp.eq.s32.totalorder %s20, 3
    %p64 = por %p62, %p63
    %p65 = scmp.ne.s32.totalorder %s54, %s55
    %p66 = scmp.eq.s32.totalorder %s20, 0
    %p67 = por %p65, %p66
    %p68 = scmp.ne.s32.totalorder %s54, %s55
    %p69 = scmp.eq.s32.totalorder %s21, 3
    %p70 = por %p68, %p69
    %p72 = scmp.ne.s32.totalorder %s55, %s71
    %p73 = scmp.eq.s32.totalorder %s21, 0
    %p74 = por %p72, %p73
    %s76 = sadd.s32 %s75, 1
    %p79 = scmp.eq.s32.totalorder %s15, 3
    %p80 = scmp.ne.s32.totalorder %s75, %s77
    %p81 = scmp.eq.s32.totalorder %s15, 0
    %p82 = por %p80, %p81
    %p83 = scmp.ne.s32.totalorder %s75, %s77
    %p84 = scmp.eq.s32.totalorder %s20, 3
    %p85 = por %p83, %p84
    %p86 = scmp.ne.s32.totalorder %s77, %s78
    %p87 = scmp.eq.s32.totalorder %s20, 0
    %p88 = por %p86, %p87
    %p89 = scmp.ne.s32.totalorder %s77, %s78
    %p90 = scmp.eq.s32.totalorder %s21, 3
    %p91 = por %p89, %p90
    %p93 = scmp.ne.s32.totalorder %s78, %s92
    %p94 = scmp.eq.s32.totalorder %s21, 0
    %p95 = por %p93, %p94
    %s97 = sadd.s32 %s96, 1
    %p100 = scmp.eq.s32.totalorder %s15, 3
    %p101 = scmp.ne.s32.totalorder %s96, %s98
    %p102 = scmp.eq.s32.totalorder %s15, 0
    %p103 = por %p101, %p102
    %p104 = scmp.ne.s32.totalorder %s96, %s98
    %p105 = scmp.eq.s32.totalorder %s20, 3
    %p106 = por %p104, %p105
    %p107 = scmp.ne.s32.totalorder %s98, %s99
    %p108 = scmp.eq.s32.totalorder %s20, 0
    %p109 = por %p107, %p108
    %p110 = scmp.ne.s32.totalorder %s98, %s99
    %p111 = scmp.eq.s32.totalorder %s21, 3
    %p112 = por %p110, %p111
    %p114 = scmp.ne.s32.totalorder %s99, %s113
    %p115 = scmp.eq.s32.totalorder %s21, 0
    %p116 = por %p114, %p115
    %s118 = sadd.s32 %s117, 1
    %p121 = scmp.eq.s32.totalorder %s15, 3
    %p122 = scmp.ne.s32.totalorder %s117, %s119
    %p123 = scmp.eq.s32.totalorder %s15, 0
    %p124 = por %p122, %p123
    %p125 = scmp.ne.s32.totalorder %s117, %s119
    %p126 = scmp.eq.s32.totalorder %s20, 3
    %p127 = por %p125, %p126
    %p128 = scmp.ne.s32.totalorder %s119, %s120
    %p129 = scmp.eq.s32.totalorder %s20, 0
    %p130 = por %p128, %p129
    %p131 = scmp.ne.s32.totalorder %s119, %s120
    %p132 = scmp.eq.s32.totalorder %s21, 3
    %p133 = por %p131, %p132
    %p135 = scmp.ne.s32.totalorder %s120, %s134
    %p136 = scmp.eq.s32.totalorder %s21, 0
    %p137 = por %p135, %p136
    %s139 = sadd.s32 %s138, 1
    %p142 = scmp.eq.s32.totalorder %s15, 3
    %p143 = scmp.ne.s32.totalorder %s138, %s140
    %p144 = scmp.eq.s32.totalorder %s15, 0
    %p145 = por %p143, %p144
    %p146 = scmp.ne.s32.totalorder %s138, %s140
    %p147 = scmp.eq.s32.totalorder %s20, 3
    %p148 = por %p146, %p147
    %p149 = scmp.ne.s32.totalorder %s140, %s141
    %p150 = scmp.eq.s32.totalorder %s20, 0
    %p151 = por %p149, %p150
    %p152 = scmp.ne.s32.totalorder %s140, %s141
    %p153 = scmp.eq.s32.totalorder %s21, 3
    %p154 = por %p152, %p153
    %p156 = scmp.ne.s32.totalorder %s141, %s155
    %p157 = scmp.eq.s32.totalorder %s21, 0
    %p158 = por %p156, %p157
    %s160 = sadd.s32 %s159, 1
    %p163 = scmp.eq.s32.totalorder %s15, 3
    %p164 = scmp.ne.s32.totalorder %s159, %s161
    %p165 = scmp.eq.s32.totalorder %s15, 0
    %p166 = por %p164, %p165
    %p167 = scmp.ne.s32.totalorder %s159, %s161
    %p168 = scmp.eq.s32.totalorder %s20, 3
    %p169 = por %p167, %p168
    %p170 = scmp.ne.s32.totalorder %s161, %s162
    %p171 = scmp.eq.s32.totalorder %s20, 0
    %p172 = por %p170, %p171
    %p173 = scmp.ne.s32.totalorder %s161, %s162
    %p174 = scmp.eq.s32.totalorder %s21, 3
    %p175 = por %p173, %p174
    %p177 = scmp.ne.s32.totalorder %s162, %s176
    %p178 = scmp.eq.s32.totalorder %s21, 0
    %p179 = por %p177, %p178
    %s181 = sadd.s32 %s180, 1
    %p184 = scmp.eq.s32.totalorder %s15, 3
    %p185 = scmp.ne.s32.totalorder %s180, %s182
    %p186 = scmp.eq.s32.totalorder %s15, 0
    %p187 = por %p185, %p186
    %p188 = scmp.ne.s32.totalorder %s180, %s182
    %p189 = scmp.eq.s32.totalorder %s20, 3
    %p190 = por %p188, %p189
    %p191 = scmp.ne.s32.totalorder %s182, %s183
    %p192 = scmp.eq.s32.totalorder %s20, 0
    %p193 = por %p191, %p192
    %p194 = scmp.ne.s32.totalorder %s182, %s183
    %p195 = scmp.eq.s32.totalorder %s21, 3
    %p196 = por %p194, %p195
    %p198 = scmp.ne.s32.totalorder %s183, %s197
    %p199 = scmp.eq.s32.totalorder %s21, 0
    %p200 = por %p198, %p199
    %s201 = ssub.s32 %s15, %s22
    %p202 = scmp.eq.s32.totalorder %s201, 0
    %s204 = sadd.s32 %s203, 1
    %s205 = scalar_select %p202, %s203, %s204
    %p208 = pneg %p202
    %p209 = scmp.eq.s32.totalorder %s15, 3
    %p210 = por %p208, %p209
    %p211 = scmp.ne.s32.totalorder %s203, %s206
    %p212 = scmp.eq.s32.totalorder %s15, 0
    %p213 = por %p211, %p212
    %p214 = scmp.ne.s32.totalorder %s203, %s206
    %p215 = scmp.eq.s32.totalorder %s20, 3
    %p216 = por %p214, %p215
    %p217 = scmp.ne.s32.totalorder %s206, %s207
    %p218 = scmp.eq.s32.totalorder %s20, 0
    %p219 = por %p217, %p218
    %p220 = scmp.ne.s32.totalorder %s206, %s207
    %p221 = scmp.eq.s32.totalorder %s21, 3
    %p222 = por %p220, %p221
    %p224 = scmp.ne.s32.totalorder %s207, %s223
    %p225 = scmp.eq.s32.totalorder %s21, 0
    %p226 = por %p224, %p225
    %p227 = scmp.le.s32.totalorder 1, %s15
    %p228 = scmp.lt.s32.totalorder %s15, 5
    %p229 = pnand %p227, %p228
    %p230 = pneg %p229
    // Predicated region
    $region9: #{cdiscriminator_forward.1} parent=5 // pred_check
      _
    $region10: #{cdiscriminator_forward.1} parent=5 // pred_check_branch
      %232 = sbr.rel (%p229) target = $region12
    $region11: #{cdiscriminator_forward.1} parent=5 // pred_region
      %s233 = ssub.s32 %s15, 1
      // Predicated region
      $region13: #{cdiscriminator_forward.1} parent=11 // pred_check
        %p234 = pneg %p88
      $region14: #{cdiscriminator_forward.1} parent=11 // pred_check_branch
        %236 = sbr.rel (%p234) target = $region16
      $region15: #{cdiscriminator_forward.1} parent=11 // pred_region
        _
      $region16: #{cdiscriminator_forward.1} parent=11 // pred_fallthru
        _
      // Predicated region
      $region17: #{cdiscriminator_forward.1} parent=11 // pred_check
        %p237 = pneg %p109
      $region18: #{cdiscriminator_forward.1} parent=11 // pred_check_branch
        %239 = sbr.rel (%p237) target = $region20
      $region19: #{cdiscriminator_forward.1} parent=11 // pred_region
        _
      $region20: #{cdiscriminator_forward.1} parent=11 // pred_fallthru
        _
      // Predicated region
      $region21: #{cdiscriminator_forward.1} parent=11 // pred_check
        %p240 = pneg %p130
      $region22: #{cdiscriminator_forward.1} parent=11 // pred_check_branch
        %242 = sbr.rel (%p240) target = $region24
      $region23: #{cdiscriminator_forward.1} parent=11 // pred_region
        _
      $region24: #{cdiscriminator_forward.1} parent=11 // pred_fallthru
        _
      // Predicated region
      $region25: #{cdiscriminator_forward.1} parent=11 // pred_check
        %p243 = pneg %p151
      $region26: #{cdiscriminator_forward.1} parent=11 // pred_check_branch
        %245 = sbr.rel (%p243) target = $region28
      $region27: #{cdiscriminator_forward.1} parent=11 // pred_region
        _
      $region28: #{cdiscriminator_forward.1} parent=11 // pred_fallthru
        _
      // Predicated region
      $region29: #{cdiscriminator_forward.1} parent=11 // pred_check
        %p246 = pneg %p172
      $region30: #{cdiscriminator_forward.1} parent=11 // pred_check_branch
        %248 = sbr.rel (%p246) target = $region32
      $region31: #{cdiscriminator_forward.1} parent=11 // pred_region
        _
      $region32: #{cdiscriminator_forward.1} parent=11 // pred_fallthru
        _
      // Predicated region
      $region33: #{cdiscriminator_forward.1} parent=11 // pred_check
        %p249 = pneg %p193
      $region34: #{cdiscriminator_forward.1} parent=11 // pred_check_branch
        %251 = sbr.rel (%p249) target = $region36
      $region35: #{cdiscriminator_forward.1} parent=11 // pred_region
        _
      $region36: #{cdiscriminator_forward.1} parent=11 // pred_fallthru
        _
    $region12: #{cdiscriminator_forward.1} parent=5 // pred_fallthru
      _
    %p252 = scmp.lt.s32.totalorder %s15, 4
    // Predicated region
    $region37: #{cdiscriminator_forward.1} parent=5 // pred_check
      %p253 = pneg %p252
    $region38: #{cdiscriminator_forward.1} parent=5 // pred_check_branch
      %255 = sbr.rel (%p253) target = $region40
    $region39: #{cdiscriminator_forward.1} parent=5 // pred_region
      // Predicated region
      $region41: #{cdiscriminator_forward.1} parent=39 // pred_check
        %p256 = pneg %p35
      $region42: #{cdiscriminator_forward.1} parent=39 // pred_check_branch
        %258 = sbr.rel (%p256) target = $region44
      $region43: #{cdiscriminator_forward.1} parent=39 // pred_region
        %s259 = smul.u32 16, %s15
        %p260 = scmp.lt.s32.totalorder %s259, 63
        %s261 = scalar_select %p260, %s259, 63
        %s262 = smul.addr %s261, 2
        %s263 = smul.addr %s262, 8
        %s264 = scalar_lea.vmem %s0, %s263
        %s265 = smul.u32 16, %s15
      $region44: #{cdiscriminator_forward.1} parent=39 // pred_fallthru
        _
      // Predicated region
      $region45: #{cdiscriminator_forward.1} parent=39 // pred_check
        %p266 = pneg %p61
      $region46: #{cdiscriminator_forward.1} parent=39 // pred_check_branch
        %268 = sbr.rel (%p266) target = $region48
      $region47: #{cdiscriminator_forward.1} parent=39 // pred_region
        %s269 = smul.u32 16, %s15
        %p270 = scmp.lt.s32.totalorder %s269, 63
        %s271 = scalar_select %p270, %s269, 63
        %s272 = smul.addr %s271, 8
        %s273 = scalar_lea.vmem %s1, %s272
        %s274 = smul.u32 16, %s15
      $region48: #{cdiscriminator_forward.1} parent=39 // pred_fallthru
        _
    $region40: #{cdiscriminator_forward.1} parent=5 // pred_fallthru
      _
    %p275 = scmp.le.s32.totalorder 1, %s15
    %p276 = scmp.lt.s32.totalorder %s15, 5
    %p277 = pnand %p275, %p276
    %p278 = pneg %p277
    // Predicated region
    $region49: #{cdiscriminator_forward.1} parent=5 // pred_check
      _
    $region50: #{cdiscriminator_forward.1} parent=5 // pred_check_branch
      %280 = sbr.rel (%p277) target = $region52
    $region51: #{cdiscriminator_forward.1} parent=5 // pred_region
      %s281 = ssub.s32 %s15, 1
      %s282 = smul.u32 16, %s20
      %p283 = scmp.lt.s32.totalorder %s282, 63
      %s284 = scalar_select %p283, %s282, 63
      %s285 = smul.addr %s284, 2
      %s286 = smul.addr %s285, 8
      %s287 = scalar_lea.vmem %s0, %s286
      %p288 = pneg %p41
      %p289 = pneg %p38
      %s290 = smul.u32 16, %s20
      %p291 = scmp.lt.s32.totalorder %s290, 63
      %s292 = scalar_select %p291, %s290, 63
      %s293 = smul.addr %s292, 8
      %s294 = scalar_lea.vmem %s1, %s293
      %p295 = pneg %p67
      %p296 = pneg %p64
      %p297 = pneg %p88
      %p298 = pneg %p85
      %p299 = pneg %p109
      %p300 = pneg %p106
      %p301 = pneg %p130
      %p302 = pneg %p127
      %p303 = pneg %p151
      %p304 = pneg %p148
      %p305 = pneg %p172
      %p306 = pneg %p169
      %p307 = pneg %p193
      %p308 = pneg %p190
      %p309 = pneg %p219
      %p310 = pneg %p216
      %p311 = scmp.lt.s32.totalorder %s20, 3
      %s312 = scalar_select %p311, %s20, 3
      %s313 = scalar_lea.vmem %s8, %s312
      %s314 = smul.u32 16, %s20
      %p315 = scmp.lt.s32.totalorder %s314, 63
      %s316 = scalar_select %p315, %s314, 63
      %s317 = smul.addr %s316, 2
      %s318 = smul.addr %s317, 8
      %s319 = scalar_lea.vmem %s0, %s318
      %s320 = smul.u32 16, %s20
      %s321 = smul.u32 16, %s20
      %p322 = scmp.lt.s32.totalorder %s321, 63
      %s323 = scalar_select %p322, %s321, 63
      %s324 = smul.addr %s323, 8
      %s325 = scalar_lea.vmem %s1, %s324
      %s326 = smul.u32 16, %s20
      %p327 = scmp.lt.s32.totalorder %s20, 3
      %s328 = scalar_select %p327, %s20, 3
      %s329 = scalar_lea.vmem %s8, %s328
      %v330 = vld [vmem:[%s319] sm:$0xff]
      %v331 = vld [vmem:[%s319 + $0x8] sm:$0xff]
      %v332 = vld [vmem:[%s319 + $0x10] sm:$0xff]
      %v333 = vld [vmem:[%s319 + $0x18] sm:$0xff]
      %v334 = vld [vmem:[%s319 + $0x20] sm:$0xff]
      %v335 = vld [vmem:[%s319 + $0x28] sm:$0xff]
      %v336 = vld [vmem:[%s319 + $0x30] sm:$0xff]
      %v337 = vld [vmem:[%s319 + $0x38] sm:$0xff]
      %v338 = vld [vmem:[%s319 + $0x40] sm:$0xff]
      %v339 = vld [vmem:[%s319 + $0x48] sm:$0xff]
      %v340 = vld [vmem:[%s319 + $0x50] sm:$0xff]
      %v341 = vld [vmem:[%s319 + $0x58] sm:$0xff]
      %v342 = vld [vmem:[%s319 + $0x60] sm:$0xff]
      %v343 = vld [vmem:[%s319 + $0x68] sm:$0xff]
      %v344 = vld [vmem:[%s319 + $0x70] sm:$0xff]
      %v345 = vld [vmem:[%s319 + $0x78] sm:$0xff]
      %v346 = vld [vmem:[%s319 + $0x80] sm:$0xff]
      %v347 = vld [vmem:[%s319 + $0x88] sm:$0xff]
      %v348 = vld [vmem:[%s319 + $0x90] sm:$0xff]
      %v349 = vld [vmem:[%s319 + $0x98] sm:$0xff]
      %v350 = vld [vmem:[%s319 + $0xa0] sm:$0xff]
      %v351 = vld [vmem:[%s319 + $0xa8] sm:$0xff]
      %v352 = vld [vmem:[%s319 + $0xb0] sm:$0xff]
      %v353 = vld [vmem:[%s319 + $0xb8] sm:$0xff]
      %v354 = vld [vmem:[%s319 + $0xc0] sm:$0xff]
      %v355 = vld [vmem:[%s319 + $0xc8] sm:$0xff]
      %v356 = vld [vmem:[%s319 + $0xd0] sm:$0xff]
      %v357 = vld [vmem:[%s319 + $0xd8] sm:$0xff]
      %v358 = vld [vmem:[%s319 + $0xe0] sm:$0xff]
      %v359 = vld [vmem:[%s319 + $0xe8] sm:$0xff]
      %v360 = vld [vmem:[%s319 + $0xf0] sm:$0xff]
      %v361 = vld [vmem:[%s319 + $0xf8] sm:$0xff]
      %v362 = vld [vmem:[%s2] sm:$0xff]
      %v363 = vld [vmem:[%s2 + $0x8] sm:$0xff]
      %v364 = vld [vmem:[%s2 + $0x10] sm:$0xff]
      %v365 = vld [vmem:[%s2 + $0x18] sm:$0xff]
      %v366 = vld [vmem:[%s2 + $0x20] sm:$0xff]
      %v367 = vld [vmem:[%s2 + $0x28] sm:$0xff]
      %v368 = vld [vmem:[%s2 + $0x30] sm:$0xff]
      %v369 = vld [vmem:[%s2 + $0x38] sm:$0xff]
      %v370 = vld [vmem:[%s2 + $0x40] sm:$0xff]
      %v371 = vld [vmem:[%s2 + $0x48] sm:$0xff]
      %v372 = vld [vmem:[%s2 + $0x50] sm:$0xff]
      %v373 = vld [vmem:[%s2 + $0x58] sm:$0xff]
      %v374 = vld [vmem:[%s2 + $0x60] sm:$0xff]
      %v375 = vld [vmem:[%s2 + $0x68] sm:$0xff]
      %v376 = vld [vmem:[%s2 + $0x70] sm:$0xff]
      %v377 = vld [vmem:[%s2 + $0x78] sm:$0xff]
      %v378 = vld [vmem:[%s2 + $0x80] sm:$0xff]
      %v379 = vld [vmem:[%s2 + $0x88] sm:$0xff]
      %v380 = vld [vmem:[%s2 + $0x90] sm:$0xff]
      %v381 = vld [vmem:[%s2 + $0x98] sm:$0xff]
      %v382 = vld [vmem:[%s2 + $0xa0] sm:$0xff]
      %v383 = vld [vmem:[%s2 + $0xa8] sm:$0xff]
      %v384 = vld [vmem:[%s2 + $0xb0] sm:$0xff]
      %v385 = vld [vmem:[%s2 + $0xb8] sm:$0xff]
      %v386 = vld [vmem:[%s2 + $0xc0] sm:$0xff]
      %v387 = vld [vmem:[%s2 + $0xc8] sm:$0xff]
      %v388 = vld [vmem:[%s2 + $0xd0] sm:$0xff]
      %v389 = vld [vmem:[%s2 + $0xd8] sm:$0xff]
      %v390 = vld [vmem:[%s2 + $0xe0] sm:$0xff]
      %v391 = vld [vmem:[%s2 + $0xe8] sm:$0xff]
      %v392 = vld [vmem:[%s2 + $0xf0] sm:$0xff]
      %v393 = vld [vmem:[%s2 + $0xf8] sm:$0xff]
      %v394 = vlaneseq
      %v395 = vand.u32 %v394, 127
      %v396 = vld [vmem:[%s325] sm:$0xff]
      %v397 = vld [vmem:[%s325 + $0x8] sm:$0xff]
      %v398 = vld [vmem:[%s325 + $0x10] sm:$0xff]
      %v399 = vld [vmem:[%s325 + $0x18] sm:$0xff]
      %v400 = vld [vmem:[%s325 + $0x20] sm:$0xff]
      %v401 = vld [vmem:[%s325 + $0x28] sm:$0xff]
      %v402 = vld [vmem:[%s325 + $0x30] sm:$0xff]
      %v403 = vld [vmem:[%s325 + $0x38] sm:$0xff]
      %v404 = vld [vmem:[%s325 + $0x40] sm:$0xff]
      %v405 = vld [vmem:[%s325 + $0x48] sm:$0xff]
      %v406 = vld [vmem:[%s325 + $0x50] sm:$0xff]
      %v407 = vld [vmem:[%s325 + $0x58] sm:$0xff]
      %v408 = vld [vmem:[%s325 + $0x60] sm:$0xff]
      %v409 = vld [vmem:[%s325 + $0x68] sm:$0xff]
      %v410 = vld [vmem:[%s325 + $0x70] sm:$0xff]
      %v411 = vld [vmem:[%s325 + $0x78] sm:$0xff]
      %412 = vset.pattern.permute.xlu0 0
      %413 = vperm.xlu0 %412, %v396
      %v414 = vpop.permute.xlu0 %413
      %415 = vset.pattern.permute.xlu0 0
      %416 = vperm.xlu0 %415, %v397
      %v417 = vpop.permute.xlu0 %416
      %418 = vset.pattern.permute.xlu0 0
      %419 = vperm.xlu0 %418, %v398
      %v420 = vpop.permute.xlu0 %419
      %421 = vset.pattern.permute.xlu0 0
      %422 = vperm.xlu0 %421, %v399
      %v423 = vpop.permute.xlu0 %422
      %424 = vset.pattern.permute.xlu0 0
      %425 = vperm.xlu0 %424, %v400
      %v426 = vpop.permute.xlu0 %425
      %427 = vset.pattern.permute.xlu0 0
      %428 = vperm.xlu0 %427, %v401
      %v429 = vpop.permute.xlu0 %428
      %430 = vset.pattern.permute.xlu0 0
      %431 = vperm.xlu0 %430, %v402
      %v432 = vpop.permute.xlu0 %431
      %433 = vset.pattern.permute.xlu0 0
      %434 = vperm.xlu0 %433, %v403
      %v435 = vpop.permute.xlu0 %434
      %436 = vset.pattern.permute.xlu0 0
      %437 = vperm.xlu0 %436, %v404
      %v438 = vpop.permute.xlu0 %437
      %439 = vset.pattern.permute.xlu0 0
      %440 = vperm.xlu0 %439, %v405
      %v441 = vpop.permute.xlu0 %440
      %442 = vset.pattern.permute.xlu0 0
      %443 = vperm.xlu0 %442, %v406
      %v444 = vpop.permute.xlu0 %443
      %445 = vset.pattern.permute.xlu0 0
      %446 = vperm.xlu0 %445, %v407
      %v447 = vpop.permute.xlu0 %446
      %448 = vset.pattern.permute.xlu0 0
      %449 = vperm.xlu0 %448, %v408
      %v450 = vpop.permute.xlu0 %449
      %451 = vset.pattern.permute.xlu0 0
      %452 = vperm.xlu0 %451, %v409
      %v453 = vpop.permute.xlu0 %452
      %454 = vset.pattern.permute.xlu0 0
      %455 = vperm.xlu0 %454, %v410
      %v456 = vpop.permute.xlu0 %455
      %457 = vset.pattern.permute.xlu0 0
      %458 = vperm.xlu0 %457, %v411
      %v459 = vpop.permute.xlu0 %458
      %vm460 = vcmp.eq.s32.totalorder %v414, %v395
      %vm461 = vcmp.eq.s32.totalorder %v417, %v395
      %vm462 = vcmp.eq.s32.totalorder %v420, %v395
      %vm463 = vcmp.eq.s32.totalorder %v423, %v395
      %vm464 = vcmp.eq.s32.totalorder %v426, %v395
      %vm465 = vcmp.eq.s32.totalorder %v429, %v395
      %vm466 = vcmp.eq.s32.totalorder %v432, %v395
      %vm467 = vcmp.eq.s32.totalorder %v435, %v395
      %vm468 = vcmp.eq.s32.totalorder %v438, %v395
      %vm469 = vcmp.eq.s32.totalorder %v441, %v395
      %vm470 = vcmp.eq.s32.totalorder %v444, %v395
      %vm471 = vcmp.eq.s32.totalorder %v447, %v395
      %vm472 = vcmp.eq.s32.totalorder %v450, %v395
      %vm473 = vcmp.eq.s32.totalorder %v453, %v395
      %vm474 = vcmp.eq.s32.totalorder %v456, %v395
      %vm475 = vcmp.eq.s32.totalorder %v459, %v395
      %v476 = vsel %vm460, 1, 0
      %v477 = vsel %vm461, 1, 0
      %v478 = vsel %vm462, 1, 0
      %v479 = vsel %vm463, 1, 0
      %v480 = vsel %vm464, 1, 0
      %v481 = vsel %vm465, 1, 0
      %v482 = vsel %vm466, 1, 0
      %v483 = vsel %vm467, 1, 0
      %v484 = vsel %vm468, 1, 0
      %v485 = vsel %vm469, 1, 0
      %v486 = vsel %vm470, 1, 0
      %v487 = vsel %vm471, 1, 0
      %v488 = vsel %vm472, 1, 0
      %v489 = vsel %vm473, 1, 0
      %v490 = vsel %vm474, 1, 0
      %v491 = vsel %vm475, 1, 0
      %v492 = vcvt.s32.f32 %v476
      %v493 = vcvt.s32.f32 %v477
      %v494 = vcvt.s32.f32 %v478
      %v495 = vcvt.s32.f32 %v479
      %v496 = vcvt.s32.f32 %v480
      %v497 = vcvt.s32.f32 %v481
      %v498 = vcvt.s32.f32 %v482
      %v499 = vcvt.s32.f32 %v483
      %v500 = vcvt.s32.f32 %v484
      %v501 = vcvt.s32.f32 %v485
      %v502 = vcvt.s32.f32 %v486
      %v503 = vcvt.s32.f32 %v487
      %v504 = vcvt.s32.f32 %v488
      %v505 = vcvt.s32.f32 %v489
      %v506 = vcvt.s32.f32 %v490
      %v507 = vcvt.s32.f32 %v491
      %v508 = vld [vmem:[%s3] sm:$0xff]
      %v509 = vld [vmem:[%s3 + $0x8] sm:$0xff]
      %v510 = vld [vmem:[%s3 + $0x10] sm:$0xff]
      %v511 = vld [vmem:[%s3 + $0x18] sm:$0xff]
      %v512 = vld [vmem:[%s3 + $0x20] sm:$0xff]
      %v513 = vld [vmem:[%s3 + $0x28] sm:$0xff]
      %v514 = vld [vmem:[%s3 + $0x30] sm:$0xff]
      %v515 = vld [vmem:[%s3 + $0x38] sm:$0xff]
      %v516 = vld [vmem:[%s3 + $0x40] sm:$0xff]
      %v517 = vld [vmem:[%s3 + $0x48] sm:$0xff]
      %v518 = vld [vmem:[%s3 + $0x50] sm:$0xff]
      %v519 = vld [vmem:[%s3 + $0x58] sm:$0xff]
      %v520 = vld [vmem:[%s3 + $0x60] sm:$0xff]
      %v521 = vld [vmem:[%s3 + $0x68] sm:$0xff]
      %v522 = vld [vmem:[%s3 + $0x70] sm:$0xff]
      %v523 = vld [vmem:[%s3 + $0x78] sm:$0xff]
      %524 = vmatpush.msra.mxu0 %v523
      %525 = vmatpush.msra.mxu0 %v522
      %526 = vmatpush.msra.mxu0 %v521
      %527 = vmatpush.msra.mxu0 %v520
      %528 = vmatpush.msra.mxu0 %v519
      %529 = vmatpush.msra.mxu0 %v518
      %530 = vmatpush.msra.mxu0 %v517
      %531 = vmatpush.msra.mxu0 %v516
      %532 = vmatpush.msra.mxu0 %v515
      %533 = vmatpush.msra.mxu0 %v514
      %534 = vmatpush.msra.mxu0 %v513
      %535 = vmatpush.msra.mxu0 %v512
      %536 = vmatpush.msra.mxu0 %v511
      %537 = vmatpush.msra.mxu0 %v510
      %538 = vmatpush.msra.mxu0 %v509
      %539 = vmatpush.msra.mxu0 %v508
      %540 = vmatmul.f32.gmra.mxu0 %v492
      %v541 = vpop.f32.mrf.mxu0
      %v542 = vadd.f32 0.0, %v541
      %543 = vmatmul.f32.gmra.mxu0 %v493
      %v544 = vpop.f32.mrf.mxu0
      %v545 = vadd.f32 0.0, %v544
      %546 = vmatmul.f32.gmra.mxu0 %v494
      %v547 = vpop.f32.mrf.mxu0
      %v548 = vadd.f32 0.0, %v547
      %549 = vmatmul.f32.gmra.mxu0 %v495
      %v550 = vpop.f32.mrf.mxu0
      %v551 = vadd.f32 0.0, %v550
      %552 = vmatmul.f32.gmra.mxu0 %v496
      %v553 = vpop.f32.mrf.mxu0
      %v554 = vadd.f32 0.0, %v553
      %555 = vmatmul.f32.gmra.mxu0 %v497
      %v556 = vpop.f32.mrf.mxu0
      %v557 = vadd.f32 0.0, %v556
      %558 = vmatmul.f32.gmra.mxu0 %v498
      %v559 = vpop.f32.mrf.mxu0
      %v560 = vadd.f32 0.0, %v559
      %561 = vmatmul.f32.gmra.mxu0 %v499
      %v562 = vpop.f32.mrf.mxu0
      %v563 = vadd.f32 0.0, %v562
      %564 = vmatmul.f32.gmra.mxu0 %v500
      %v565 = vpop.f32.mrf.mxu0
      %v566 = vadd.f32 0.0, %v565
      %567 = vmatmul.f32.gmra.mxu0 %v501
      %v568 = vpop.f32.mrf.mxu0
      %v569 = vadd.f32 0.0, %v568
      %570 = vmatmul.f32.gmra.mxu0 %v502
      %v571 = vpop.f32.mrf.mxu0
      %v572 = vadd.f32 0.0, %v571
      %573 = vmatmul.f32.gmra.mxu0 %v503
      %v574 = vpop.f32.mrf.mxu0
      %v575 = vadd.f32 0.0, %v574
      %576 = vmatmul.f32.gmra.mxu0 %v504
      %v577 = vpop.f32.mrf.mxu0
      %v578 = vadd.f32 0.0, %v577
      %579 = vmatmul.f32.gmra.mxu0 %v505
      %v580 = vpop.f32.mrf.mxu0
      %v581 = vadd.f32 0.0, %v580
      %582 = vmatmul.f32.gmra.mxu0 %v506
      %v583 = vpop.f32.mrf.mxu0
      %v584 = vadd.f32 0.0, %v583
      %585 = vmatmul.f32.gmra.mxu0 %v507
      %v586 = vpop.f32.mrf.mxu0
      %v587 = vadd.f32 0.0, %v586
      %588 = vdwg.mxu0
      %589 = vmatpush.msra.mxu0 %v377
      %590 = vmatpush.msra.mxu0 %v376
      %591 = vmatpush.msra.mxu0 %v375
      %592 = vmatpush.msra.mxu0 %v374
      %593 = vmatpush.msra.mxu0 %v373
      %594 = vmatpush.msra.mxu0 %v372
      %595 = vmatpush.msra.mxu0 %v371
      %596 = vmatpush.msra.mxu0 %v370
      %597 = vmatpush.msra.mxu0 %v369
      %598 = vmatpush.msra.mxu0 %v368
      %599 = vmatpush.msra.mxu0 %v367
      %600 = vmatpush.msra.mxu0 %v366
      %601 = vmatpush.msra.mxu0 %v365
      %602 = vmatpush.msra.mxu0 %v364
      %603 = vmatpush.msra.mxu0 %v363
      %604 = vmatpush.msra.mxu0 %v362
      %605 = vmatmul.f32.gmra.mxu0 %v330
      %v606 = vpop.f32.mrf.mxu0
      %v607 = vadd.f32 %v542, %v606
      %608 = vmatmul.f32.gmra.mxu0 %v332
      %v609 = vpop.f32.mrf.mxu0
      %v610 = vadd.f32 %v545, %v609
      %611 = vmatmul.f32.gmra.mxu0 %v334
      %v612 = vpop.f32.mrf.mxu0
      %v613 = vadd.f32 %v548, %v612
      %614 = vmatmul.f32.gmra.mxu0 %v336
      %v615 = vpop.f32.mrf.mxu0
      %v616 = vadd.f32 %v551, %v615
      %617 = vmatmul.f32.gmra.mxu0 %v338
      %v618 = vpop.f32.mrf.mxu0
      %v619 = vadd.f32 %v554, %v618
      %620 = vmatmul.f32.gmra.mxu0 %v340
      %v621 = vpop.f32.mrf.mxu0
      %v622 = vadd.f32 %v557, %v621
      %623 = vmatmul.f32.gmra.mxu0 %v342
      %v624 = vpop.f32.mrf.mxu0
      %v625 = vadd.f32 %v560, %v624
      %626 = vmatmul.f32.gmra.mxu0 %v344
      %v627 = vpop.f32.mrf.mxu0
      %v628 = vadd.f32 %v563, %v627
      %629 = vmatmul.f32.gmra.mxu0 %v346
      %v630 = vpop.f32.mrf.mxu0
      %v631 = vadd.f32 %v566, %v630
      %632 = vmatmul.f32.gmra.mxu0 %v348
      %v633 = vpop.f32.mrf.mxu0
      %v634 = vadd.f32 %v569, %v633
      %635 = vmatmul.f32.gmra.mxu0 %v350
      %v636 = vpop.f32.mrf.mxu0
      %v637 = vadd.f32 %v572, %v636
      %638 = vmatmul.f32.gmra.mxu0 %v352
      %v639 = vpop.f32.mrf.mxu0
      %v640 = vadd.f32 %v575, %v639
      %641 = vmatmul.f32.gmra.mxu0 %v354
      %v642 = vpop.f32.mrf.mxu0
      %v643 = vadd.f32 %v578, %v642
      %644 = vmatmul.f32.gmra.mxu0 %v356
      %v645 = vpop.f32.mrf.mxu0
      %v646 = vadd.f32 %v581, %v645
      %647 = vmatmul.f32.gmra.mxu0 %v358
      %v648 = vpop.f32.mrf.mxu0
      %v649 = vadd.f32 %v584, %v648
      %650 = vmatmul.f32.gmra.mxu0 %v360
      %v651 = vpop.f32.mrf.mxu0
      %v652 = vadd.f32 %v587, %v651
      %653 = vdwg.mxu0
      %654 = vmatpush.msra.mxu0 %v393
      %655 = vmatpush.msra.mxu0 %v392
      %656 = vmatpush.msra.mxu0 %v391
      %657 = vmatpush.msra.mxu0 %v390
      %658 = vmatpush.msra.mxu0 %v389
      %659 = vmatpush.msra.mxu0 %v388
      %660 = vmatpush.msra.mxu0 %v387
      %661 = vmatpush.msra.mxu0 %v386
      %662 = vmatpush.msra.mxu0 %v385
      %663 = vmatpush.msra.mxu0 %v384
      %664 = vmatpush.msra.mxu0 %v383
      %665 = vmatpush.msra.mxu0 %v382
      %666 = vmatpush.msra.mxu0 %v381
      %667 = vmatpush.msra.mxu0 %v380
      %668 = vmatpush.msra.mxu0 %v379
      %669 = vmatpush.msra.mxu0 %v378
      %670 = vmatmul.f32.gmra.mxu0 %v331
      %v671 = vpop.f32.mrf.mxu0
      %v672 = vadd.f32 %v607, %v671
      %673 = vmatmul.f32.gmra.mxu0 %v333
      %v674 = vpop.f32.mrf.mxu0
      %v675 = vadd.f32 %v610, %v674
      %676 = vmatmul.f32.gmra.mxu0 %v335
      %v677 = vpop.f32.mrf.mxu0
      %v678 = vadd.f32 %v613, %v677
      %679 = vmatmul.f32.gmra.mxu0 %v337
      %v680 = vpop.f32.mrf.mxu0
      %v681 = vadd.f32 %v616, %v680
      %682 = vmatmul.f32.gmra.mxu0 %v339
      %v683 = vpop.f32.mrf.mxu0
      %v684 = vadd.f32 %v619, %v683
      %685 = vmatmul.f32.gmra.mxu0 %v341
      %v686 = vpop.f32.mrf.mxu0
      %v687 = vadd.f32 %v622, %v686
      %688 = vmatmul.f32.gmra.mxu0 %v343
      %v689 = vpop.f32.mrf.mxu0
      %v690 = vadd.f32 %v625, %v689
      %691 = vmatmul.f32.gmra.mxu0 %v345
      %v692 = vpop.f32.mrf.mxu0
      %v693 = vadd.f32 %v628, %v692
      %694 = vmatmul.f32.gmra.mxu0 %v347
      %v695 = vpop.f32.mrf.mxu0
      %v696 = vadd.f32 %v631, %v695
      %697 = vmatmul.f32.gmra.mxu0 %v349
      %v698 = vpop.f32.mrf.mxu0
      %v699 = vadd.f32 %v634, %v698
      %700 = vmatmul.f32.gmra.mxu0 %v351
      %v701 = vpop.f32.mrf.mxu0
      %v702 = vadd.f32 %v637, %v701
      %703 = vmatmul.f32.gmra.mxu0 %v353
      %v704 = vpop.f32.mrf.mxu0
      %v705 = vadd.f32 %v640, %v704
      %706 = vmatmul.f32.gmra.mxu0 %v355
      %v707 = vpop.f32.mrf.mxu0
      %v708 = vadd.f32 %v643, %v707
      %709 = vmatmul.f32.gmra.mxu0 %v357
      %v710 = vpop.f32.mrf.mxu0
      %v711 = vadd.f32 %v646, %v710
      %712 = vmatmul.f32.gmra.mxu0 %v359
      %v713 = vpop.f32.mrf.mxu0
      %v714 = vadd.f32 %v649, %v713
      %715 = vmatmul.f32.gmra.mxu0 %v361
      %v716 = vpop.f32.mrf.mxu0
      %v717 = vadd.f32 %v652, %v716
      %718 = vdwg.mxu0
      %vm719 = vcmp.gt.f32.partialorder %v672, 0.0
      %vm720 = vcmp.gt.f32.partialorder %v675, 0.0
      %vm721 = vcmp.gt.f32.partialorder %v678, 0.0
      %vm722 = vcmp.gt.f32.partialorder %v681, 0.0
      %vm723 = vcmp.gt.f32.partialorder %v684, 0.0
      %vm724 = vcmp.gt.f32.partialorder %v687, 0.0
      %vm725 = vcmp.gt.f32.partialorder %v690, 0.0
      %vm726 = vcmp.gt.f32.partialorder %v693, 0.0
      %vm727 = vcmp.gt.f32.partialorder %v696, 0.0
      %vm728 = vcmp.gt.f32.partialorder %v699, 0.0
      %vm729 = vcmp.gt.f32.partialorder %v702, 0.0
      %vm730 = vcmp.gt.f32.partialorder %v705, 0.0
      %vm731 = vcmp.gt.f32.partialorder %v708, 0.0
      %vm732 = vcmp.gt.f32.partialorder %v711, 0.0
      %vm733 = vcmp.gt.f32.partialorder %v714, 0.0
      %vm734 = vcmp.gt.f32.partialorder %v717, 0.0
      %v735 = vmul.f32 %v672, 0.2
      %v736 = vmul.f32 %v675, 0.2
      %v737 = vmul.f32 %v678, 0.2
      %v738 = vmul.f32 %v681, 0.2
      %v739 = vmul.f32 %v684, 0.2
      %v740 = vmul.f32 %v687, 0.2
      %v741 = vmul.f32 %v690, 0.2
      %v742 = vmul.f32 %v693, 0.2
      %v743 = vmul.f32 %v696, 0.2
      %v744 = vmul.f32 %v699, 0.2
      %v745 = vmul.f32 %v702, 0.2
      %v746 = vmul.f32 %v705, 0.2
      %v747 = vmul.f32 %v708, 0.2
      %v748 = vmul.f32 %v711, 0.2
      %v749 = vmul.f32 %v714, 0.2
      %v750 = vmul.f32 %v717, 0.2
      %v751 = vsel %vm719, %v672, %v735
      %v752 = vsel %vm720, %v675, %v736
      %v753 = vsel %vm721, %v678, %v737
      %v754 = vsel %vm722, %v681, %v738
      %v755 = vsel %vm723, %v684, %v739
      %v756 = vsel %vm724, %v687, %v740
      %v757 = vsel %vm725, %v690, %v741
      %v758 = vsel %vm726, %v693, %v742
      %v759 = vsel %vm727, %v696, %v743
      %v760 = vsel %vm728, %v699, %v744
      %v761 = vsel %vm729, %v702, %v745
      %v762 = vsel %vm730, %v705, %v746
      %v763 = vsel %vm731, %v708, %v747
      %v764 = vsel %vm732, %v711, %v748
      %v765 = vsel %vm733, %v714, %v749
      %v766 = vsel %vm734, %v717, %v750
      %v767 = vld [vmem:[%s4] sm:$0xff]
      %v768 = vld [vmem:[%s4 + $0x8] sm:$0xff]
      %v769 = vld [vmem:[%s4 + $0x10] sm:$0xff]
      %v770 = vld [vmem:[%s4 + $0x18] sm:$0xff]
      %v771 = vld [vmem:[%s4 + $0x20] sm:$0xff]
      %v772 = vld [vmem:[%s4 + $0x28] sm:$0xff]
      %v773 = vld [vmem:[%s4 + $0x30] sm:$0xff]
      %v774 = vld [vmem:[%s4 + $0x38] sm:$0xff]
      %v775 = vld [vmem:[%s4 + $0x40] sm:$0xff]
      %v776 = vld [vmem:[%s4 + $0x48] sm:$0xff]
      %v777 = vld [vmem:[%s4 + $0x50] sm:$0xff]
      %v778 = vld [vmem:[%s4 + $0x58] sm:$0xff]
      %v779 = vld [vmem:[%s4 + $0x60] sm:$0xff]
      %v780 = vld [vmem:[%s4 + $0x68] sm:$0xff]
      %v781 = vld [vmem:[%s4 + $0x70] sm:$0xff]
      %v782 = vld [vmem:[%s4 + $0x78] sm:$0xff]
      %v783 = vld [vmem:[%s5] sm:$0x1]
      %v785 = vperm.slane %v783, 0
      %787 = vmatpush.msra.mxu0 %v782
      %788 = vmatpush.msra.mxu0 %v781
      %789 = vmatpush.msra.mxu0 %v780
      %790 = vmatpush.msra.mxu0 %v779
      %791 = vmatpush.msra.mxu0 %v778
      %792 = vmatpush.msra.mxu0 %v777
      %793 = vmatpush.msra.mxu0 %v776
      %794 = vmatpush.msra.mxu0 %v775
      %795 = vmatpush.msra.mxu0 %v774
      %796 = vmatpush.msra.mxu0 %v773
      %797 = vmatpush.msra.mxu0 %v772
      %798 = vmatpush.msra.mxu0 %v771
      %799 = vmatpush.msra.mxu0 %v770
      %800 = vmatpush.msra.mxu0 %v769
      %801 = vmatpush.msra.mxu0 %v768
      %802 = vmatpush.msra.mxu0 %v767
      %803 = vmatmul.f32.gmra.mxu0 %v751
      %v804 = vpop.f32.mrf.mxu0
      %v805 = vadd.f32 %v785, %v804
      %806 = vmatmul.f32.gmra.mxu0 %v752
      %v807 = vpop.f32.mrf.mxu0
      %v808 = vadd.f32 %v785, %v807
      %809 = vmatmul.f32.gmra.mxu0 %v753
      %v810 = vpop.f32.mrf.mxu0
      %v811 = vadd.f32 %v785, %v810
      %812 = vmatmul.f32.gmra.mxu0 %v754
      %v813 = vpop.f32.mrf.mxu0
      %v814 = vadd.f32 %v785, %v813
      %815 = vmatmul.f32.gmra.mxu0 %v755
      %v816 = vpop.f32.mrf.mxu0
      %v817 = vadd.f32 %v785, %v816
      %818 = vmatmul.f32.gmra.mxu0 %v756
      %v819 = vpop.f32.mrf.mxu0
      %v820 = vadd.f32 %v785, %v819
      %821 = vmatmul.f32.gmra.mxu0 %v757
      %v822 = vpop.f32.mrf.mxu0
      %v823 = vadd.f32 %v785, %v822
      %824 = vmatmul.f32.gmra.mxu0 %v758
      %v825 = vpop.f32.mrf.mxu0
      %v826 = vadd.f32 %v785, %v825
      %827 = vmatmul.f32.gmra.mxu0 %v759
      %v828 = vpop.f32.mrf.mxu0
      %v829 = vadd.f32 %v785, %v828
      %830 = vmatmul.f32.gmra.mxu0 %v760
      %v831 = vpop.f32.mrf.mxu0
      %v832 = vadd.f32 %v785, %v831
      %833 = vmatmul.f32.gmra.mxu0 %v761
      %v834 = vpop.f32.mrf.mxu0
      %v835 = vadd.f32 %v785, %v834
      %836 = vmatmul.f32.gmra.mxu0 %v762
      %v837 = vpop.f32.mrf.mxu0
      %v838 = vadd.f32 %v785, %v837
      %839 = vmatmul.f32.gmra.mxu0 %v763
      %v840 = vpop.f32.mrf.mxu0
      %v841 = vadd.f32 %v785, %v840
      %842 = vmatmul.f32.gmra.mxu0 %v764
      %v843 = vpop.f32.mrf.mxu0
      %v844 = vadd.f32 %v785, %v843
      %845 = vmatmul.f32.gmra.mxu0 %v765
      %v846 = vpop.f32.mrf.mxu0
      %v847 = vadd.f32 %v785, %v846
      %848 = vmatmul.f32.gmra.mxu0 %v766
      %v849 = vpop.f32.mrf.mxu0
      %v850 = vadd.f32 %v785, %v849
      %851 = vdwg.mxu0
      %vm852 = vcmp.gt.f32.partialorder %v805, 0.0
      %vm853 = vcmp.gt.f32.partialorder %v808, 0.0
      %vm854 = vcmp.gt.f32.partialorder %v811, 0.0
      %vm855 = vcmp.gt.f32.partialorder %v814, 0.0
      %vm856 = vcmp.gt.f32.partialorder %v817, 0.0
      %vm857 = vcmp.gt.f32.partialorder %v820, 0.0
      %vm858 = vcmp.gt.f32.partialorder %v823, 0.0
      %vm859 = vcmp.gt.f32.partialorder %v826, 0.0
      %vm860 = vcmp.gt.f32.partialorder %v829, 0.0
      %vm861 = vcmp.gt.f32.partialorder %v832, 0.0
      %vm862 = vcmp.gt.f32.partialorder %v835, 0.0
      %vm863 = vcmp.gt.f32.partialorder %v838, 0.0
      %vm864 = vcmp.gt.f32.partialorder %v841, 0.0
      %vm865 = vcmp.gt.f32.partialorder %v844, 0.0
      %vm866 = vcmp.gt.f32.partialorder %v847, 0.0
      %vm867 = vcmp.gt.f32.partialorder %v850, 0.0
      %v868 = vmul.f32 %v805, 0.2
      %v869 = vmul.f32 %v808, 0.2
      %v870 = vmul.f32 %v811, 0.2
      %v871 = vmul.f32 %v814, 0.2
      %v872 = vmul.f32 %v817, 0.2
      %v873 = vmul.f32 %v820, 0.2
      %v874 = vmul.f32 %v823, 0.2
      %v875 = vmul.f32 %v826, 0.2
      %v876 = vmul.f32 %v829, 0.2
      %v877 = vmul.f32 %v832, 0.2
      %v878 = vmul.f32 %v835, 0.2
      %v879 = vmul.f32 %v838, 0.2
      %v880 = vmul.f32 %v841, 0.2
      %v881 = vmul.f32 %v844, 0.2
      %v882 = vmul.f32 %v847, 0.2
      %v883 = vmul.f32 %v850, 0.2
      %v884 = vsel %vm852, %v805, %v868
      %v885 = vsel %vm853, %v808, %v869
      %v886 = vsel %vm854, %v811, %v870
      %v887 = vsel %vm855, %v814, %v871
      %v888 = vsel %vm856, %v817, %v872
      %v889 = vsel %vm857, %v820, %v873
      %v890 = vsel %vm858, %v823, %v874
      %v891 = vsel %vm859, %v826, %v875
      %v892 = vsel %vm860, %v829, %v876
      %v893 = vsel %vm861, %v832, %v877
      %v894 = vsel %vm862, %v835, %v878
      %v895 = vsel %vm863, %v838, %v879
      %v896 = vsel %vm864, %v841, %v880
      %v897 = vsel %vm865, %v844, %v881
      %v898 = vsel %vm866, %v847, %v882
      %v899 = vsel %vm867, %v850, %v883
      %v900 = vld [vmem:[%s6] sm:$0x1]
      %s901 = sld [smem:[#allocation2]]
      %v902 = vstv %s901
      %903 = vmatpush.xpose.msra.mxu0 %v899
      %904 = vmatpush.xpose.msra.mxu0 %v898
      %905 = vmatpush.xpose.msra.mxu0 %v897
      %906 = vmatpush.xpose.msra.mxu0 %v896
      %907 = vmatpush.xpose.msra.mxu0 %v895
      %908 = vmatpush.xpose.msra.mxu0 %v894
      %909 = vmatpush.xpose.msra.mxu0 %v893
      %910 = vmatpush.xpose.msra.mxu0 %v892
      %911 = vmatpush.xpose.msra.mxu0 %v891
      %912 = vmatpush.xpose.msra.mxu0 %v890
      %913 = vmatpush.xpose.msra.mxu0 %v889
      %914 = vmatpush.xpose.msra.mxu0 %v888
      %915 = vmatpush.xpose.msra.mxu0 %v887
      %916 = vmatpush.xpose.msra.mxu0 %v886
      %917 = vmatpush.xpose.msra.mxu0 %v885
      %918 = vmatpush.xpose.msra.mxu0 %v884
      %919 = vmatmul.f32.gmra.mxu0 %v900
      %v920 = vpop.f32.mrf.mxu0
      %v921 = vadd.f32 %v902, %v920
      %922 = vdwg.mxu0
      %v923 = vxor.u32 %v921, 2147483648
      %v924 = vmul.f32 %v923, 1.442695
      %v925 = vpow.pop %v924
      %v926 = vadd.f32 %v925, 1.0
      %v927 = vrcp.pop %v926
      %v928 = vmul.f32 %v926, %v927
      %v929 = vsub.f32 1.0, %v928
      %v930 = vmul.f32 %v927, %v929
      %v931 = vadd.f32 %v927, %v930
      %vm932 = vweird.f32 %v926
      %vm933 = vweird.f32 %v927
      %vm934 = vmor %vm932, %vm933
      %v935 = vsel %vm934, %v927, %v931
      %v936 = vand.u32 2147483647, %v926
      %vm937 = vcmp.eq.f32.partialorder %v936, 8.507059e+37
      %v938 = vand.u32 %v926, 2147483648
      %v939 = vor.u32 1.1754944e-38, %v938
      %v940 = vsel %vm937, %v939, %v935
      %v941 = vmul.f32 1.0, %v940
      %942 = vst [vmem:[%s329] sm:$0x1] %v941
      %p943 = scmp.lt.s32.totalorder %s20, 3
      %s944 = scalar_select %p943, %s20, 3
      %s945 = scalar_lea.vmem %s8, %s944
      // Predicated region
      $region53: #{cdiscriminator_forward.1} parent=51 // pred_check
        %p946 = pneg %p216
      $region54: #{cdiscriminator_forward.1} parent=51 // pred_check_branch
        %948 = sbr.rel (%p946) target = $region56
      $region55: #{cdiscriminator_forward.1} parent=51 // pred_region
        _
      $region56: #{cdiscriminator_forward.1} parent=51 // pred_fallthru
        _
    $region52: #{cdiscriminator_forward.1} parent=5 // pred_fallthru
      _
    %p949 = scmp.le.s32.totalorder 2, %s15
    // Predicated region
    $region57: #{cdiscriminator_forward.1} parent=5 // pred_check
      %p950 = pneg %p949
    $region58: #{cdiscriminator_forward.1} parent=5 // pred_check_branch
      %952 = sbr.rel (%p950) target = $region60
    $region59: #{cdiscriminator_forward.1} parent=5 // pred_region
      %s953 = ssub.s32 %s15, 2
      // Predicated region
      $region61: #{cdiscriminator_forward.1} parent=59 // pred_check
        %p954 = pneg %p222
      $region62: #{cdiscriminator_forward.1} parent=59 // pred_check_branch
        %956 = sbr.rel (%p954) target = $region64
      $region63: #{cdiscriminator_forward.1} parent=59 // pred_region
        %p957 = scmp.lt.s32.totalorder %s21, 3
        %s958 = scalar_select %p957, %s21, 3
        %s959 = scalar_lea.vmem %s8, %s958
      $region64: #{cdiscriminator_forward.1} parent=59 // pred_fallthru
        _
    $region60: #{cdiscriminator_forward.1} parent=5 // pred_fallthru
      _
  $region6: #{cdiscriminator_forward.1} parent=0 // loop_footer
    %s19 = sadd.s32 1, %s15
  $region7: #{cdiscriminator_forward.1} parent=0 // loop_footer_branch
    %14 = sbr.rel target = $region3
  $region8: #{cdiscriminator_forward.1} parent=0 // loop_exit
    _

</llo_original>
